<compile_context>
chip_gen: v5e
topology: v5e:2x2
jax: 0.10.0
libtpu: 0.0.40
codegen_flags: <defaults>
</compile_context>

<pallas_src>
import jax
import jax.numpy as jnp
from jax.experimental import pallas as pl
from jax.experimental.pallas import tpu as pltpu


def _round_up(x, m):
    return (x + m - 1) // m * m


def _choose_tile_n(n, *, sublane=16, target=256):
    """Pick (TN, N_padded). TN is a multiple of `sublane`; N_padded % TN == 0.

    Prefers an exact divisor of n (no padding) that still leaves >= 2 tiles when
    n is big enough (keeps both v7x TensorCores fed at B=1); otherwise pads n up
    to a multiple of a sublane-friendly TN.
    """
    hi = min(target, n if n < 2 * sublane else n // 2)
    for t in range(hi, sublane - 1, -1):
        if n % t == 0 and t % sublane == 0:
            return t, n
    tn = min(target, _round_up(max(sublane, -(-n // 2)), sublane))
    return tn, _round_up(n, tn)


def _embed_kernel(patches_ref, w_ref, pos_ref, o_ref):
    # patches_ref: (1, TN, Kpad) matmul dtype
    # w_ref:       (Kpad, D)     matmul dtype (pre-transposed, K on sublanes)
    # pos_ref:     (TN, D)       bf16/f32, conv bias already folded in
    # o_ref:       (1, TN, D)    out dtype
    y = jax.lax.dot_general(
        patches_ref[0], w_ref[...],
        dimension_numbers=(((1,), (0,)), ((), ())),
        preferred_element_type=jnp.float32)                 # (TN, D) f32 acc
    o_ref[0] = (y + pos_ref[...].astype(jnp.float32)).astype(o_ref.dtype)


def siglip_vision_embeddings(pixel_values, conv_w, conv_b, pos_embed, patch_size,
                             *, matmul_dtype=jnp.bfloat16,
                             out_dtype=jnp.bfloat16, tile_n=None):
    """pixel_values: (B, C, H, W)   conv_w: (D, C, P, P)   conv_b: (D,)
       pos_embed: (N, D).  Returns (B, N, D) in `out_dtype`."""
    B, C, H, W = pixel_values.shape
    D = conv_w.shape[0]
    P = patch_size
    assert H % P == 0 and W % P == 0, "image size must be divisible by patch size"
    Hp, Wp = H // P, W // P
    N = Hp * Wp
    K = C * P * P
    Kpad = _round_up(K, 128)

    if tile_n is not None:
        TN = _round_up(tile_n, 16)            # validate caller-supplied tile
        Npad = _round_up(N, TN)
    else:
        TN, Npad = _choose_tile_n(N)
    out_dtype = jnp.dtype(out_dtype)
    pos_dtype = jnp.bfloat16 if out_dtype.itemsize < 4 else jnp.float32

    # ---- glue (weight/pos prep below is one-time param prep in a real model;
    #      the patchify is the remaining per-call HBM round-trip, see TODO) ----
    x = pixel_values.reshape(B, C, Hp, P, Wp, P)
    x = jnp.transpose(x, (0, 2, 4, 1, 3, 5))              # (B, Hp, Wp, C, P, P)
    patches = x.reshape(B, N, K).astype(matmul_dtype)
    if Npad != N or Kpad != K:
        patches = jnp.pad(patches, ((0, 0), (0, Npad - N), (0, Kpad - K)))

    # Pre-transposed weight: (Kpad, D), canonical MXU layout, built once.
    w_mat = conv_w.reshape(D, K).T.astype(matmul_dtype)   # (K, D)
    if Kpad != K:
        w_mat = jnp.pad(w_mat, ((0, Kpad - K), (0, 0)))

    # Fold the conv bias into the position embedding once (f32), store narrow.
    pos_pb = (pos_embed.astype(jnp.float32)
              + conv_b.astype(jnp.float32)[None, :]).astype(pos_dtype)
    if Npad != N:
        pos_pb = jnp.pad(pos_pb, ((0, Npad - N), (0, 0)))

    bytes_accessed = (patches.size * patches.dtype.itemsize
                      + w_mat.size * w_mat.dtype.itemsize
                      + pos_pb.size * pos_pb.dtype.itemsize
                      + B * Npad * D * out_dtype.itemsize)
    cost = pl.CostEstimate(flops=2 * B * Npad * Kpad * D,
                           transcendentals=0,
                           bytes_accessed=int(bytes_accessed))

    out = pl.pallas_call(
        _embed_kernel,
        out_shape=jax.ShapeDtypeStruct((B, Npad, D), out_dtype),
        # Patch tiles on the outer axis, batch innermost: pos+bias block is
        # invariant over the inner axis (fetched N/TN times total), weight is
        # grid-invariant (fetched once).
        grid=(Npad // TN, B),
        in_specs=[
            pl.BlockSpec((1, TN, Kpad), lambda n, b: (b, n, 0)),
            pl.BlockSpec((Kpad, D), lambda n, b: (0, 0)),
            pl.BlockSpec((TN, D), lambda n, b: (n, 0)),
        ],
        out_specs=pl.BlockSpec((1, TN, D), lambda n, b: (b, n, 0)),
        compiler_params=pltpu.CompilerParams(
            dimension_semantics=("parallel", "parallel")),
        cost_estimate=cost,
    )(patches, w_mat, pos_pb)

    if Npad != N:
        out = out[:, :N, :]
    return out


def _reference(pixel_values, conv_w, conv_b, pos_embed, P):
    # Strided "valid" conv (NCHW/OIHW) + flatten(2).transpose(1,2) + pos add.
    B, C, H, W = pixel_values.shape
    D = conv_w.shape[0]
    N = (H // P) * (W // P)
    conv = jax.lax.conv_general_dilated(
        pixel_values, conv_w, window_strides=(P, P), padding="VALID",
        dimension_numbers=("NCHW", "OIHW", "NCHW"))        # (B, D, Hp, Wp)
    out = conv.reshape(B, D, N).transpose(0, 2, 1) + conv_b.reshape(1, 1, D)
    return out + pos_embed[None]


if __name__ == "__main__":
    key = jax.random.PRNGKey(0)

    # ---- config 1: image 16x16, patch 4 -> N=16 patches, D=128 ----
    B, C, IMG, P, D = 2, 3, 16, 4, 128
    N = (IMG // P) ** 2
    k_px, k_w, k_b, k_pos, key = jax.random.split(key, 5)
    pixel_values = jax.random.normal(k_px, (B, C, IMG, IMG), dtype=jnp.float32)
    conv_w = jax.random.normal(k_w, (D, C, P, P), dtype=jnp.float32) * 0.02
    conv_b = jax.random.normal(k_b, (D,), dtype=jnp.float32) * 0.02
    pos_embed = jax.random.normal(k_pos, (N, D), dtype=jnp.float32) * 0.02
    ref = _reference(pixel_values, conv_w, conv_b, pos_embed, P)

    # f32 operands + f32 output: numerically exact (zero-padded K/N).
    out_f32 = siglip_vision_embeddings(pixel_values, conv_w, conv_b, pos_embed, P,
                                       matmul_dtype=jnp.float32,
                                       out_dtype=jnp.float32)
    out_f32 = jax.block_until_ready(out_f32)
    assert out_f32.shape == (B, N, D)
    assert jnp.allclose(out_f32, ref, atol=1e-4, rtol=1e-4)

    # Default path: bf16 operands / bf16 pos / bf16 output, f32 accumulate.
    out_bf16 = siglip_vision_embeddings(pixel_values, conv_w, conv_b, pos_embed, P)
    out_bf16 = jax.block_until_ready(out_bf16)
    assert out_bf16.shape == (B, N, D)
    assert out_bf16.dtype == jnp.bfloat16
    assert jnp.allclose(out_bf16.astype(jnp.float32), ref, atol=3e-2, rtol=3e-2)

    # ---- config 2: image 12x12, patch 4 -> N=9 (exercises the padded-N path) ----
    B2, IMG2 = 1, 12
    N2 = (IMG2 // P) ** 2
    k_px2, k_pos2, key = jax.random.split(key, 3)
    pixel_values2 = jax.random.normal(k_px2, (B2, C, IMG2, IMG2), dtype=jnp.float32)
    pos_embed2 = jax.random.normal(k_pos2, (N2, D), dtype=jnp.float32) * 0.02
    ref2 = _reference(pixel_values2, conv_w, conv_b, pos_embed2, P)
    out2 = siglip_vision_embeddings(pixel_values2, conv_w, conv_b, pos_embed2, P,
                                    matmul_dtype=jnp.float32,
                                    out_dtype=jnp.float32)
    out2 = jax.block_until_ready(out2)
    assert out2.shape == (B2, N2, D)
    assert jnp.allclose(out2, ref2, atol=1e-4, rtol=1e-4)

    print("KERNEL_OK")
</pallas_src>

<mosaic_0001>
module attributes {stable_mosaic.version = 11 : i64} {
  func.func @_embed_kernel(%arg0: i32, %arg1: i32, %arg2: memref<1x16x128xf32, #tpu.memory_space<vmem>>, %arg3: memref<128x128xf32, #tpu.memory_space<vmem>>, %arg4: memref<16x128xf32, #tpu.memory_space<vmem>>, %arg5: memref<1x16x128xf32, #tpu.memory_space<vmem>>) attributes {dimension_semantics = [#tpu.dimension_semantics<parallel>, #tpu.dimension_semantics<parallel>], iteration_bounds = array<i64: 1, 2>, scalar_prefetch = 0 : i64, scratch_operands = 0 : i64, tpu.core_type = #tpu.core_type<tc>, window_params = [{transform_indices = @transform_0, window_bounds = array<i64: 1, 16, 128>}, {pipeline_mode = #tpu.pipeline_mode<synchronous>, transform_indices = @transform_1, window_bounds = array<i64: 128, 128>}, {transform_indices = @transform_2, window_bounds = array<i64: 16, 128>}, {transform_indices = @transform_3, window_bounds = array<i64: 1, 16, 128>}]} {
    %c0 = arith.constant 0 : index
    %c0_0 = arith.constant 0 : index
    %c0_1 = arith.constant 0 : index
    %0 = vector.load %arg2[%c0, %c0_0, %c0_1] : memref<1x16x128xf32, #tpu.memory_space<vmem>>, vector<1x16x128xf32>
    %1 = vector.shape_cast %0 : vector<1x16x128xf32> to vector<16x128xf32>
    %c0_2 = arith.constant 0 : index
    %c0_3 = arith.constant 0 : index
    %2 = vector.load %arg3[%c0_2, %c0_3] : memref<128x128xf32, #tpu.memory_space<vmem>>, vector<128x128xf32>
    %cst = arith.constant dense<0.000000e+00> : vector<16x128xf32>
    %3 = tpu.matmul %1, %2, %cst {dimension_numbers = #tpu.dot_dimension_numbers<[1], [0], [0], [1], [0, 0, 1, 1], [], []>} : vector<16x128xf32>, vector<128x128xf32>, vector<16x128xf32> -> vector<16x128xf32>
    %c0_4 = arith.constant 0 : index
    %c0_5 = arith.constant 0 : index
    %4 = vector.load %arg4[%c0_4, %c0_5] : memref<16x128xf32, #tpu.memory_space<vmem>>, vector<16x128xf32>
    %5 = arith.addf %3, %4 : vector<16x128xf32>
    %c0_6 = arith.constant 0 : index
    %c0_7 = arith.constant 0 : index
    %c0_8 = arith.constant 0 : index
    %6 = vector.load %arg5[%c0_6, %c0_7, %c0_8] : memref<1x16x128xf32, #tpu.memory_space<vmem>>, vector<1x16x128xf32>
    %7 = vector.shape_cast %6 : vector<1x16x128xf32> to vector<16x128xf32>
    %8 = vector.shape_cast %5 : vector<16x128xf32> to vector<1x16x128xf32>
    tpu.vector_store %arg5[%c0_6, %c0_7, %c0_8], %8 {strides = array<i32>} : memref<1x16x128xf32, #tpu.memory_space<vmem>>, vector<1x16x128xf32>,
    return
  }
  func.func @transform_0(%arg0: i32, %arg1: i32) -> (i32, i32, i32) {
    %c0_i32 = arith.constant 0 : i32
    %c0_i32_0 = arith.constant 0 : i32
    return %arg1, %arg0, %c0_i32 : i32, i32, i32
  }
  func.func @transform_1(%arg0: i32, %arg1: i32) -> (i32, i32) {
    %c0_i32 = arith.constant 0 : i32
    %c0_i32_0 = arith.constant 0 : i32
    %c0_i32_1 = arith.constant 0 : i32
    return %c0_i32, %c0_i32_0 : i32, i32
  }
  func.func @transform_2(%arg0: i32, %arg1: i32) -> (i32, i32) {
    %c0_i32 = arith.constant 0 : i32
    %c0_i32_0 = arith.constant 0 : i32
    return %arg0, %c0_i32 : i32, i32
  }
  func.func @transform_3(%arg0: i32, %arg1: i32) -> (i32, i32, i32) {
    %c0_i32 = arith.constant 0 : i32
    %c0_i32_0 = arith.constant 0 : i32
    return %arg1, %arg0, %c0_i32 : i32, i32, i32
  }
}

</mosaic_0001>

<llo_original>
// kernel: tpu_custom_call.1
$region0: #{tpu_custom_call.1}
  #allocation0 [shape = 'u32[]', space=smem, size = 0x4, offset = 0x4, fixed_abs, tag = 'smem constant byte address 0x4 - core index']
  #allocation1 [shape = 'u32[72,128]{1,0:T(1,128)}', space=vmem, size = 0x9000, scoped, tag = 'internal scratch']
  %s0 = inlined_call_operand.hbm [shape: f32[2,16,128], index: 0, kind: input, shape index: {}]
  %s1 = inlined_call_operand.hbm [shape: f32[128,128], index: 1, kind: input, shape index: {}]
  %s2 = inlined_call_operand.hbm [shape: f32[16,128], index: 2, kind: input, shape index: {}]
  %s3 = inlined_call_operand.hbm [shape: f32[2,16,128], index: 3, kind: output, shape index: {}]
  %s4 = sld [smem:[#allocation0]]
  $region57: #{tpu_custom_call.1} parent=0
    _
  %s6 = ssub.s32 1, %s4
  %s7 = scalar_select 0, %s6, %s4
  $region1: #{tpu_custom_call.1} parent=0
    #allocation2 [shape = 'u8[16384]{0}', space=vmem, size = 0x4000, scoped, tag = 'input window, operand 0']
    #allocation3 [shape = 's32[2]{0}', space=sflag, size = 0x8, scoped, tag = 'scoped memory for tpu_custom_call.1']
    #allocation4 [shape = 's32[2]{0}', space=sflag, size = 0x8, scoped, tag = 'scoped memory for tpu_custom_call.1']
    #allocation5 [shape = 'u8[65536]{0}', space=vmem, size = 0x10000, scoped, tag = 'input window, operand 1, single buffered']
    #allocation6 [shape = 's32[1]{0}', space=sflag, size = 0x4, scoped, tag = 'scoped memory for tpu_custom_call.1']
    #allocation7 [shape = 'u8[8192]{0}', space=vmem, size = 0x2000, scoped, tag = 'input window, operand 2, single buffered']
    #allocation8 [shape = 'u8[16384]{0}', space=vmem, size = 0x4000, scoped, tag = 'output window, operand 0']
    %8 = vsyncpa [#allocation3], 0
    %s9 = scalar_lea.sflag [#allocation3], 1
    %10 = vsyncpa %s9, 0
    %11 = vsyncpa [#allocation6], 0
    %12 = vsyncpa [#allocation4], 0
    %s13 = scalar_lea.sflag [#allocation4], 1
    %14 = vsyncpa %s13, 0
    loop: start=0, step=1, limit=4
    $region2: #{tpu_custom_call.1} parent=1 // loop_pre_header
      _
    $region3: #{tpu_custom_call.1} parent=1 // loop_header
      %s16 = sphi 0, %s20
      %p17 = scmp.ge.s32.totalorder %s16, 4
      %s23 = sphi 0, %s35
      %s24 = sphi 0, %s31
      %s25 = sphi 0, %s23
      %s26 = sphi 0, %s24
      %s27 = sphi 0, %s25
      %s28 = sphi 0, %s26
      %s40 = sphi 0, %s42
      %s43 = sphi 0, %s40
      %s44 = sphi 0, %s43
      %s60 = sphi 0, %s44
      %s64 = sphi 0, %s64
      %s66 = sphi 0, %s64
      %s67 = sphi 0, %s66
      %s81 = sphi 0, %s67
      %s87 = sphi 0, %s89
      %s90 = sphi 0, %s87
      %s91 = sphi 0, %s90
      %s107 = sphi 0, %s91
      %s115 = sphi 0, %s117
      %s118 = sphi 0, %s115
      %s119 = sphi 0, %s118
      %s135 = sphi 0, %s119
    $region4: #{tpu_custom_call.1} parent=1 // loop_header_branch
      %19 = sbr.rel (%p17) target = $region8
    $region5: #{tpu_custom_call.1} parent=1 // loop_body
      %s21 = ssub.s32 %s16, 1
      %s22 = ssub.s32 %s16, 2
      %s29 = sadd.s32 1, %s24
      %p30 = scmp.ge.s32.totalorder %s29, 2
      %s31 = scalar_select %p30, 0, %s29
      %s32 = sadd.s32 1, %s23
      %s33 = scalar_select %p30, %s32, %s23
      %p34 = scmp.ge.s32.totalorder %s33, 1
      %s35 = scalar_select %p34, 0, %s33
      %s36 = ssub.s32 %s24, %s31
      %s37 = ssub.s32 %s23, %s35
      %s38 = sor.u32 %s36, %s37
      %p39 = scmp.eq.s32.totalorder %s38, 0
      %s41 = sadd.s32 %s40, 1
      %s42 = scalar_select %p39, %s40, %s41
      %p45 = pneg %p39
      %p46 = scmp.eq.s32.totalorder %s16, 1
      %p47 = por %p45, %p46
      %p48 = scmp.ne.s32.totalorder %s40, %s43
      %p49 = scmp.eq.s32.totalorder %s16, 0
      %p50 = por %p48, %p49
      %p51 = scmp.ne.s32.totalorder %s40, %s43
      %p52 = scmp.eq.s32.totalorder %s21, 1
      %p53 = por %p51, %p52
      %p54 = scmp.ne.s32.totalorder %s43, %s44
      %p55 = scmp.eq.s32.totalorder %s21, 0
      %p56 = por %p54, %p55
      %p57 = scmp.ne.s32.totalorder %s43, %s44
      %p58 = scmp.eq.s32.totalorder %s22, 1
      %p59 = por %p57, %p58
      %p61 = scmp.ne.s32.totalorder %s44, %s60
      %p62 = scmp.eq.s32.totalorder %s22, 0
      %p63 = por %p61, %p62
      %s65 = sadd.s32 %s64, 1
      %p68 = scmp.eq.s32.totalorder %s16, 1
      %p69 = scmp.ne.s32.totalorder %s64, %s66
      %p70 = scmp.eq.s32.totalorder %s16, 0
      %p71 = por %p69, %p70
      %p72 = scmp.ne.s32.totalorder %s64, %s66
      %p73 = scmp.eq.s32.totalorder %s21, 1
      %p74 = por %p72, %p73
      %p75 = scmp.ne.s32.totalorder %s66, %s67
      %p76 = scmp.eq.s32.totalorder %s21, 0
      %p77 = por %p75, %p76
      %p78 = scmp.ne.s32.totalorder %s66, %s67
      %p79 = scmp.eq.s32.totalorder %s22, 1
      %p80 = por %p78, %p79
      %p82 = scmp.ne.s32.totalorder %s67, %s81
      %p83 = scmp.eq.s32.totalorder %s22, 0
      %p84 = por %p82, %p83
      %s85 = ssub.s32 %s23, %s35
      %p86 = scmp.eq.s32.totalorder %s85, 0
      %s88 = sadd.s32 %s87, 1
      %s89 = scalar_select %p86, %s87, %s88
      %p92 = pneg %p86
      %p93 = scmp.eq.s32.totalorder %s16, 1
      %p94 = por %p92, %p93
      %p95 = scmp.ne.s32.totalorder %s87, %s90
      %p96 = scmp.eq.s32.totalorder %s16, 0
      %p97 = por %p95, %p96
      %p98 = scmp.ne.s32.totalorder %s87, %s90
      %p99 = scmp.eq.s32.totalorder %s21, 1
      %p100 = por %p98, %p99
      %p101 = scmp.ne.s32.totalorder %s90, %s91
      %p102 = scmp.eq.s32.totalorder %s21, 0
      %p103 = por %p101, %p102
      %p104 = scmp.ne.s32.totalorder %s90, %s91
      %p105 = scmp.eq.s32.totalorder %s22, 1
      %p106 = por %p104, %p105
      %p108 = scmp.ne.s32.totalorder %s91, %s107
      %p109 = scmp.eq.s32.totalorder %s22, 0
      %p110 = por %p108, %p109
      %s111 = ssub.s32 %s24, %s31
      %s112 = ssub.s32 %s23, %s35
      %s113 = sor.u32 %s111, %s112
      %p114 = scmp.eq.s32.totalorder %s113, 0
      %s116 = sadd.s32 %s115, 1
      %s117 = scalar_select %p114, %s115, %s116
      %p120 = pneg %p114
      %p121 = scmp.eq.s32.totalorder %s16, 1
      %p122 = por %p120, %p121
      %p123 = scmp.ne.s32.totalorder %s115, %s118
      %p124 = scmp.eq.s32.totalorder %s16, 0
      %p125 = por %p123, %p124
      %p126 = scmp.ne.s32.totalorder %s115, %s118
      %p127 = scmp.eq.s32.totalorder %s21, 1
      %p128 = por %p126, %p127
      %p129 = scmp.ne.s32.totalorder %s118, %s119
      %p130 = scmp.eq.s32.totalorder %s21, 0
      %p131 = por %p129, %p130
      %p132 = scmp.ne.s32.totalorder %s118, %s119
      %p133 = scmp.eq.s32.totalorder %s22, 1
      %p134 = por %p132, %p133
      %p136 = scmp.ne.s32.totalorder %s119, %s135
      %p137 = scmp.eq.s32.totalorder %s22, 0
      %p138 = por %p136, %p137
      %p139 = scmp.le.s32.totalorder 1, %s16
      %p140 = scmp.lt.s32.totalorder %s16, 3
      %p141 = pnand %p139, %p140
      %p142 = pneg %p141
      // Predicated region
      $region9: #{tpu_custom_call.1} parent=5 // pred_check
        _
      $region10: #{tpu_custom_call.1} parent=5 // pred_check_branch
        %144 = sbr.rel (%p141) target = $region12
      $region11: #{tpu_custom_call.1} parent=5 // pred_region
        %s145 = ssub.s32 %s16, 1
        // Predicated region
        $region13: #{tpu_custom_call.1} parent=11 // pred_check
          %p146 = pneg %p77
        $region14: #{tpu_custom_call.1} parent=11 // pred_check_branch
          %148 = sbr.rel (%p146) target = $region16
        $region15: #{tpu_custom_call.1} parent=11 // pred_region
          %150 = vsyncadd [#allocation6], 0
          %s151 = sshll.u32 %s1, 4
          %s152 = int_to_ptr.hbm [resolvable:$true] %s151
          %s153 = sshll.u32 [#allocation5], 4
          %s154 = int_to_ptr.vmem [resolvable:$true] %s153
          %159 = dma.hbm_to_vmem [thread:$0]  %s152, 2048, %s154, [#allocation6], 128, 128, 8
        $region16: #{tpu_custom_call.1} parent=11 // pred_fallthru
          _
        // Predicated region
        $region17: #{tpu_custom_call.1} parent=11 // pred_check
          %p160 = pneg %p103
        $region18: #{tpu_custom_call.1} parent=11 // pred_check_branch
          %162 = sbr.rel (%p160) target = $region20
        $region19: #{tpu_custom_call.1} parent=11 // pred_region
          %s163 = smul.u32 2, %s25
          %165 = vsyncadd [#allocation6], 0
          %s166 = smul.addr %s163, 8
          %s167 = scalar_lea.hbm %s2, %s166
          %s168 = sshll.u32 %s167, 4
          %s169 = int_to_ptr.hbm [resolvable:$true] %s168
          %s170 = sshll.u32 [#allocation7], 4
          %s171 = int_to_ptr.vmem [resolvable:$true] %s170
          %176 = dma.hbm_to_vmem [thread:$0]  %s169, 256, %s171, [#allocation6], 128, 128, 8
        $region20: #{tpu_custom_call.1} parent=11 // pred_fallthru
          _
      $region12: #{tpu_custom_call.1} parent=5 // pred_fallthru
        _
      %p177 = scmp.lt.s32.totalorder %s16, 2
      // Predicated region
      $region21: #{tpu_custom_call.1} parent=5 // pred_check
        %p178 = pneg %p177
      $region22: #{tpu_custom_call.1} parent=5 // pred_check_branch
        %180 = sbr.rel (%p178) target = $region24
      $region23: #{tpu_custom_call.1} parent=5 // pred_region
        // Predicated region
        $region25: #{tpu_custom_call.1} parent=23 // pred_check
          %p181 = pneg %p50
        $region26: #{tpu_custom_call.1} parent=23 // pred_check_branch
          %183 = sbr.rel (%p181) target = $region28
        $region27: #{tpu_custom_call.1} parent=23 // pred_region
          %s184 = sand.u32 %s40, 1
          %s185 = scalar_lea.sflag [#allocation3], %s184
          %s186 = sand.u32 %s40, 1
          %s187 = smul.addr %s186, 16
          %s188 = scalar_lea.vmem [#allocation2], %s187
          %s189 = smul.u32 2, %s23
          %191 = vsyncadd %s185, 0
          %s192 = smul.addr %s24, 2
          %s193 = sadd.s32 %s189, %s192
          %s194 = smul.addr %s193, 8
          %s195 = scalar_lea.hbm %s0, %s194
          %s196 = sshll.u32 %s195, 4
          %s197 = int_to_ptr.hbm [resolvable:$true] %s196
          %s198 = sshll.u32 %s188, 4
          %s199 = int_to_ptr.vmem [resolvable:$true] %s198
          %204 = dma.hbm_to_vmem [thread:$0]  %s197, 256, %s199, %s185, 128, 128, 8
        $region28: #{tpu_custom_call.1} parent=23 // pred_fallthru
          _
      $region24: #{tpu_custom_call.1} parent=5 // pred_fallthru
        _
      %p205 = scmp.le.s32.totalorder 1, %s16
      %p206 = scmp.lt.s32.totalorder %s16, 3
      %p207 = pnand %p205, %p206
      %p208 = pneg %p207
      // Predicated region
      $region29: #{tpu_custom_call.1} parent=5 // pred_check
        _
      $region30: #{tpu_custom_call.1} parent=5 // pred_check_branch
        %210 = sbr.rel (%p207) target = $region32
      $region31: #{tpu_custom_call.1} parent=5 // pred_region
        %s211 = ssub.s32 %s16, 1
        %s212 = sand.u32 %s43, 1
        %s213 = scalar_lea.sflag [#allocation3], %s212
        %s214 = sand.u32 %s43, 1
        %s215 = smul.addr %s214, 16
        %s216 = scalar_lea.vmem [#allocation2], %s215
        // Predicated region
        $region33: #{tpu_custom_call.1} parent=31 // pred_check
          %p217 = pneg %p56
        $region34: #{tpu_custom_call.1} parent=31 // pred_check_branch
          %219 = sbr.rel (%p217) target = $region36
        $region35: #{tpu_custom_call.1} parent=31 // pred_region
          %221 = dma.done %s213, 256
        $region36: #{tpu_custom_call.1} parent=31 // pred_fallthru
          _
        // Predicated region
        $region37: #{tpu_custom_call.1} parent=31 // pred_check
          %p222 = pneg %p77
        $region38: #{tpu_custom_call.1} parent=31 // pred_check_branch
          %224 = sbr.rel (%p222) target = $region40
        $region39: #{tpu_custom_call.1} parent=31 // pred_region
          %226 = dma.done [#allocation6], 2048
        $region40: #{tpu_custom_call.1} parent=31 // pred_fallthru
          _
        // Predicated region
        $region41: #{tpu_custom_call.1} parent=31 // pred_check
          %p227 = pneg %p103
        $region42: #{tpu_custom_call.1} parent=31 // pred_check_branch
          %229 = sbr.rel (%p227) target = $region44
        $region43: #{tpu_custom_call.1} parent=31 // pred_region
          %231 = dma.done [#allocation6], 256
        $region44: #{tpu_custom_call.1} parent=31 // pred_fallthru
          _
        %s232 = sand.u32 %s43, 1
        %s233 = scalar_lea.sflag [#allocation3], %s232
        %s234 = sand.u32 %s43, 1
        %s235 = smul.addr %s234, 16
        %s236 = scalar_lea.vmem [#allocation2], %s235
        %p237 = pneg %p56
        %p238 = pneg %p53
        %p239 = pneg %p77
        %p240 = pneg %p74
        %p241 = pneg %p103
        %p242 = pneg %p100
        %p243 = pneg %p131
        %p244 = pneg %p128
        %s245 = sand.u32 %s118, 1
        %s246 = scalar_lea.sflag [#allocation4], %s245
        %s247 = sand.u32 %s118, 1
        %s248 = smul.addr %s247, 16
        %s249 = scalar_lea.vmem [#allocation8], %s248
        %s250 = smul.u32 2, %s25
        %s251 = smul.u32 2, %s25
        %s252 = smul.u32 2, %s25
        %v253 = vld [vmem:[%s216] sm:$0xff]
        %v254 = vld [vmem:[%s216 + $0x8] sm:$0xff]
        %v255 = vld [vmem:[#allocation5] sm:$0xff]
        %v256 = vld [vmem:[#allocation5 + $0x8] sm:$0xff]
        %v257 = vld [vmem:[#allocation5 + $0x10] sm:$0xff]
        %v258 = vld [vmem:[#allocation5 + $0x18] sm:$0xff]
        %v259 = vld [vmem:[#allocation5 + $0x20] sm:$0xff]
        %v260 = vld [vmem:[#allocation5 + $0x28] sm:$0xff]
        %v261 = vld [vmem:[#allocation5 + $0x30] sm:$0xff]
        %v262 = vld [vmem:[#allocation5 + $0x38] sm:$0xff]
        %v263 = vld [vmem:[#allocation5 + $0x40] sm:$0xff]
        %v264 = vld [vmem:[#allocation5 + $0x48] sm:$0xff]
        %v265 = vld [vmem:[#allocation5 + $0x50] sm:$0xff]
        %v266 = vld [vmem:[#allocation5 + $0x58] sm:$0xff]
        %v267 = vld [vmem:[#allocation5 + $0x60] sm:$0xff]
        %v268 = vld [vmem:[#allocation5 + $0x68] sm:$0xff]
        %v269 = vld [vmem:[#allocation5 + $0x70] sm:$0xff]
        %v270 = vld [vmem:[#allocation5 + $0x78] sm:$0xff]
        %v271 = vld [vmem:[#allocation7] sm:$0xff]
        %v272 = vld [vmem:[#allocation7 + $0x8] sm:$0xff]
        %273 = vmatpush.msra.mxu0 %v270
        %274 = vmatpush.msra.mxu0 %v269
        %275 = vmatpush.msra.mxu0 %v268
        %276 = vmatpush.msra.mxu0 %v267
        %277 = vmatpush.msra.mxu0 %v266
        %278 = vmatpush.msra.mxu0 %v265
        %279 = vmatpush.msra.mxu0 %v264
        %280 = vmatpush.msra.mxu0 %v263
        %281 = vmatpush.msra.mxu0 %v262
        %282 = vmatpush.msra.mxu0 %v261
        %283 = vmatpush.msra.mxu0 %v260
        %284 = vmatpush.msra.mxu0 %v259
        %285 = vmatpush.msra.mxu0 %v258
        %286 = vmatpush.msra.mxu0 %v257
        %287 = vmatpush.msra.mxu0 %v256
        %288 = vmatpush.msra.mxu0 %v255
        %289 = vmatmul.f32.gmra.mxu0 %v253
        %v290 = vpop.f32.mrf.mxu0
        %v291 = vadd.f32 %v271, %v290
        %292 = vmatmul.f32.gmra.mxu0 %v254
        %v293 = vpop.f32.mrf.mxu0
        %v294 = vadd.f32 %v272, %v293
        %295 = vdwg.mxu0
        %296 = vst [vmem:[%s249] sm:$0xff] %v291
        %297 = vst [vmem:[%s249 + $0x8] sm:$0xff] %v294
        %s298 = sand.u32 %s118, 1
        %s299 = scalar_lea.sflag [#allocation4], %s298
        %s300 = sand.u32 %s118, 1
        %s301 = smul.addr %s300, 16
        %s302 = scalar_lea.vmem [#allocation8], %s301
        // Predicated region
        $region45: #{tpu_custom_call.1} parent=31 // pred_check
          %p303 = pneg %p128
        $region46: #{tpu_custom_call.1} parent=31 // pred_check_branch
          %305 = sbr.rel (%p303) target = $region48
        $region47: #{tpu_custom_call.1} parent=31 // pred_region
          %s306 = smul.u32 2, %s25
          %308 = vsyncadd %s299, 0
          %s309 = smul.addr %s26, 2
          %s310 = sadd.s32 %s306, %s309
          %s311 = smul.addr %s310, 8
          %s312 = scalar_lea.hbm %s3, %s311
          %s313 = sshll.u32 %s302, 4
          %s314 = int_to_ptr.vmem [resolvable:$true] %s313
          %s315 = sshll.u32 %s312, 4
          %s316 = int_to_ptr.hbm [resolvable:$true] %s315
          %321 = dma.vmem_to_hbm [thread:$0]  %s314, 256, %s316, %s299, 128, 128, 8
        $region48: #{tpu_custom_call.1} parent=31 // pred_fallthru
          _
      $region32: #{tpu_custom_call.1} parent=5 // pred_fallthru
        _
      %p322 = scmp.le.s32.totalorder 2, %s16
      // Predicated region
      $region49: #{tpu_custom_call.1} parent=5 // pred_check
        %p323 = pneg %p322
      $region50: #{tpu_custom_call.1} parent=5 // pred_check_branch
        %325 = sbr.rel (%p323) target = $region52
      $region51: #{tpu_custom_call.1} parent=5 // pred_region
        %s326 = ssub.s32 %s16, 2
        // Predicated region
        $region53: #{tpu_custom_call.1} parent=51 // pred_check
          %p327 = pneg %p134
        $region54: #{tpu_custom_call.1} parent=51 // pred_check_branch
          %329 = sbr.rel (%p327) target = $region56
        $region55: #{tpu_custom_call.1} parent=51 // pred_region
          %s330 = sand.u32 %s119, 1
          %s331 = scalar_lea.sflag [#allocation4], %s330
          %s332 = sand.u32 %s119, 1
          %s333 = smul.addr %s332, 16
          %s334 = scalar_lea.vmem [#allocation8], %s333
          %336 = dma.done %s331, 256
        $region56: #{tpu_custom_call.1} parent=51 // pred_fallthru
          _
      $region52: #{tpu_custom_call.1} parent=5 // pred_fallthru
        _
    $region6: #{tpu_custom_call.1} parent=1 // loop_footer
      %s20 = sadd.s32 1, %s16
    $region7: #{tpu_custom_call.1} parent=1 // loop_footer_branch
      %15 = sbr.rel target = $region3
    $region8: #{tpu_custom_call.1} parent=1 // loop_exit
      _
    %337 = vsyncpa [#allocation3], 1
    %s338 = scalar_lea.sflag [#allocation3], 1
    %339 = vsyncpa %s338, 1
    %340 = vsyncpa [#allocation6], 1
    %341 = vsyncpa [#allocation4], 1
    %s342 = scalar_lea.sflag [#allocation4], 1
    %343 = vsyncpa %s342, 1

</llo_original>
